<compile_context>
chip_gen: v7x
topology: tpu7x:2x2x1
jax: 0.10.0
libtpu: 0.0.40
codegen_flags: <defaults>
</compile_context>

<pallas_src>
import functools

import numpy as np
import jax
import jax.numpy as jnp
from jax.experimental import pallas as pl
from jax.experimental.pallas import tpu as pltpu


# ---------------------------------------------------------------------------
# Host-side layout: NCHW <-> tap-major (reverse-Morton) lanes, batch innermost.
# One reshape + transpose each way (XLA copy kernels), no gathers.
# ---------------------------------------------------------------------------
def _to_tap_layout(x, levels, bblk):
    """(B, C, H, W) -> (B//bblk, C, H*W*bblk), tap-major spatial, batch innermost."""
    B, C, H, W = x.shape
    nl = levels - 1
    Hd, Wd = H >> nl, W >> nl
    G = B // bblk
    x = x.reshape((G, bblk, C, Hd) + (2,) * nl + (Wd,) + (2,) * nl)
    # axes: 0:G 1:bblk 2:C 3:Hd 4..3+nl:h bits (MSB..LSB) 4+nl:Wd 5+nl..4+2nl:w bits
    h_bits = list(range(4, 4 + nl))
    wd_ax = 4 + nl
    w_bits = list(range(5 + nl, 5 + 2 * nl))
    perm = [0, 2]
    for k in range(1, nl + 1):                 # level-k tap = k-th lowest (h, w) bits
        perm += [h_bits[nl - k], w_bits[nl - k]]
    perm += [3, wd_ax, 1]                      # deepest (Hd, Wd) row-major, batch last
    return jnp.transpose(x, perm).reshape(G, C, H * W * bblk)


def _from_tap_layout(y, levels, bblk, B, C, H, W):
    """Inverse of _to_tap_layout."""
    nl = levels - 1
    Hd, Wd = H >> nl, W >> nl
    G = B // bblk
    y = y.reshape((G, C) + (2, 2) * nl + (Hd, Wd, bblk))
    hd_ax, wd_ax, b_ax = 2 + 2 * nl, 3 + 2 * nl, 4 + 2 * nl
    perm = [0, b_ax, 1, hd_ax]
    perm += [2 + 2 * i for i in range(nl - 1, -1, -1)]   # h bits, MSB first
    perm += [wd_ax]
    perm += [3 + 2 * i for i in range(nl - 1, -1, -1)]   # w bits, MSB first
    return jnp.transpose(y, perm).reshape(B, C, H, W)


def _choose_bblk(B, S0, target_lanes=512):
    """Coalesce batch until level-0 lanes >= target, keeping an even grid >= 2."""
    divisors = [d for d in range(1, B + 1) if B % d == 0]
    pref = [d for d in divisors if B // d >= 2 and (B // d) % 2 == 0] or divisors
    for d in pref:
        if d * S0 >= target_lanes:
            return d
    return pref[-1]


# ---------------------------------------------------------------------------
# Fused whole-network Pallas kernel (one grid step == bblk batch elements)
# ---------------------------------------------------------------------------
def _make_kernel(levels, sizes, bblk, c_half):
    nlev = levels - 1
    lane = [s * bblk for s in sizes]          # lane width of each pyramid level
    inv_pool = 1.0 / float(sizes[-1])

    def kernel(x_ref, in_w_ref, in_b_ref, dn_w_ref, dn_b_ref,
               up_wt_ref, up_wb_ref, up_b_ref, pool_ref, bcast_ref, out_ref):
        f32 = jnp.float32
        cdt = x_ref.dtype
        x = x_ref[0]                                               # (C, lane[0])

        # ---- in_conv: 1x1 conv (BN scale folded) + shift + ReLU (f32 epilogue)
        f0 = jnp.maximum(
            jnp.dot(in_w_ref[...], x, preferred_element_type=f32) + in_b_ref[...],
            0.0)                                                   # (Ch, lane[0])
        # Early store of the top output half: frees f0 and lets the output
        # writeback overlap the rest of the pipeline (no final channel concat).
        out_ref[0, :c_half, :] = f0.astype(out_ref.dtype)

        # ---- down path: each 2x2/stride-2 conv is ONE K=4*Ch matmul; the 4
        #      contiguous tap lane-blocks are restacked onto the contraction axis.
        prev = f0                                                  # f32 activation
        feat_hi = []                                               # levels 1..nlev (cdt)
        for l in range(nlev):
            n = lane[l + 1]
            stacked = jnp.concatenate(
                [prev[:, t * n:(t + 1) * n] for t in range(4)], axis=0
            ).astype(cdt)                                          # (4Ch, n)
            y = jnp.maximum(
                jnp.dot(dn_w_ref[l], stacked, preferred_element_type=f32)
                + dn_b_ref[l], 0.0)                                # (Ch, n) f32
            feat_hi.append(y.astype(cdt))
            prev = y

        # ---- adaptive_avg_pool2d(.,1): per-batch-element mean via a 0/1
        #      pooling matmul (batch rides the innermost lane position).
        pooled = (jnp.dot(feat_hi[-1], pool_ref[...], preferred_element_type=f32)
                  * inv_pool).astype(cdt)                          # (Ch, bblk)

        # ---- up path: concat fused via split weights; W_bot is applied to the
        #      UN-replicated carry and only its (cheap) result is replicated.
        carry = pooled
        for m in range(nlev - 1, -1, -1):
            zc = jnp.dot(up_wb_ref[m], carry, preferred_element_type=f32)
            if m == nlev - 1:
                if bblk == 1:
                    zfull = zc                       # (Ch, 1) broadcasts in the add
                else:
                    # batch-periodic spatial broadcast via a 0/1 matmul
                    zfull = jnp.dot(zc.astype(cdt), bcast_ref[...],
                                    preferred_element_type=f32)    # (Ch, lane[nlev])
            else:
                # nearest 2x upsample of the x-branch == 4-tap lane replication
                zfull = jnp.concatenate([zc] * 4, axis=1)           # (Ch, lane[m+1])
            u = jnp.maximum(
                jnp.dot(up_wt_ref[m], feat_hi[m], preferred_element_type=f32)
                + zfull + up_b_ref[m], 0.0)                          # (Ch, lane[m+1])
            carry = u.astype(cdt)

        # ---- final 2x upsample to lane[0] and bottom-half store
        out_ref[0, c_half:, :] = jnp.concatenate([carry] * 4, axis=1).astype(out_ref.dtype)

    return kernel


# ---------------------------------------------------------------------------
# Forward wrapper (NCHW in / NCHW out)
# ---------------------------------------------------------------------------
def weight_mapper_forward(x_nchw, pp, levels, bblk=None):
    B, C, H, W = x_nchw.shape
    assert levels >= 2, "this Pallas implementation requires levels >= 2"
    assert C % 2 == 0
    nl = levels - 1
    assert H % (1 << nl) == 0 and W % (1 << nl) == 0
    c_half = C // 2
    sizes = [(H >> l) * (W >> l) for l in range(levels)]
    S0 = sizes[0]
    s_last = sizes[-1]
    cdt = np.dtype(pp["in_w"].dtype)           # streaming / matmul-operand dtype

    if bblk is None:
        bblk = _choose_bblk(B, S0)
    assert B % bblk == 0
    G = B // bblk
    L0 = S0 * bblk

    # 0/1 pooling / broadcast matrices for the global-average branch
    # (values are exact in bf16; the 1/s_last scale is applied in f32 in-kernel).
    eye = np.eye(bblk, dtype=np.float32)
    pool_mat = jnp.asarray(np.kron(np.ones((s_last, 1), np.float32), eye), dtype=cdt)
    bcast_mat = jnp.asarray(np.kron(np.ones((1, s_last), np.float32), eye), dtype=cdt)

    # cast first (halves relayout bandwidth), then one transpose-based relayout
    x_lay = _to_tap_layout(x_nchw.astype(cdt), levels, bblk)        # (G, C, L0)

    # VMEM budget from the actual block bytes: double-buffered in/out blocks,
    # parameters, and headroom for in-kernel intermediates.  Capped at 64 MiB
    # (v7x has 64 MiB per TensorCore; v5e/v6e have 128 MiB physical).
    blk_bytes = C * L0 * cdt.itemsize
    par_bytes = sum(int(np.prod(v.shape)) * np.dtype(v.dtype).itemsize
                    for v in pp.values())
    par_bytes += int(pool_mat.size + bcast_mat.size) * cdt.itemsize
    vmem_limit = int(min(64 << 20, max(16 << 20, 10 * blk_bytes + 2 * par_bytes)))

    out_lay = pl.pallas_call(
        _make_kernel(levels, sizes, bblk, c_half),
        out_shape=jax.ShapeDtypeStruct((G, C, L0), cdt),
        grid_spec=pltpu.PrefetchScalarGridSpec(
            num_scalar_prefetch=0,
            grid=(G,),
            in_specs=[
                pl.BlockSpec((1, C, L0), lambda g: (g, 0, 0)),               # x
                pl.BlockSpec((c_half, C), lambda g: (0, 0)),                 # in_w
                pl.BlockSpec((c_half, 1), lambda g: (0, 0)),                 # in_shift
                pl.BlockSpec((nl, c_half, 4 * c_half), lambda g: (0, 0, 0)), # dn_w (K-fused)
                pl.BlockSpec((nl, c_half, 1), lambda g: (0, 0, 0)),          # dn_shift
                pl.BlockSpec((nl, c_half, c_half), lambda g: (0, 0, 0)),     # up_wt
                pl.BlockSpec((nl, c_half, c_half), lambda g: (0, 0, 0)),     # up_wb
                pl.BlockSpec((nl, c_half, 1), lambda g: (0, 0, 0)),          # up_shift
                pl.BlockSpec((s_last * bblk, bblk), lambda g: (0, 0)),       # pool
                pl.BlockSpec((bblk, s_last * bblk), lambda g: (0, 0)),       # bcast
            ],
            out_specs=pl.BlockSpec((1, C, L0), lambda g: (g, 0, 0)),
        ),
        compiler_params=pltpu.CompilerParams(
            dimension_semantics=("parallel",),       # batch blocks -> both TCs on v7x
            vmem_limit_bytes=vmem_limit,
        ),
    )(x_lay, pp["in_w"], pp["in_shift"], pp["dn_w"], pp["dn_shift"],
      pp["up_wt"], pp["up_wb"], pp["up_shift"], pool_mat, bcast_mat)

    out = _from_tap_layout(out_lay, levels, bblk, B, C, H, W)
    return out.astype(x_nchw.dtype)


# ---------------------------------------------------------------------------
# Parameters: synthetic torch-layout init + Pallas preparation (BN folding,
# weight splitting / tap-fused stacking, dtype cast)
# ---------------------------------------------------------------------------
def init_weight_mapper_params(key, in_channels, levels):
    c_half = in_channels // 2

    def conv_w(k, cout, cin, kh, kw):
        return 0.1 * jax.random.normal(k, (cout, cin, kh, kw), jnp.float32)

    def bn(k, c):
        k1, k2, k3, k4 = jax.random.split(k, 4)
        return dict(gamma=jax.random.uniform(k1, (c,), jnp.float32, 0.5, 1.5),
                    beta=0.1 * jax.random.normal(k2, (c,), jnp.float32),
                    mean=0.1 * jax.random.normal(k3, (c,), jnp.float32),
                    var=jax.random.uniform(k4, (c,), jnp.float32, 0.5, 1.5))

    keys = iter(jax.random.split(key, 2 + 4 * (levels - 1)))
    raw = dict(
        in_conv=dict(w=conv_w(next(keys), c_half, in_channels, 1, 1),
                     bn=bn(next(keys), c_half)),
        down=[dict(w=conv_w(next(keys), c_half, c_half, 2, 2),
                   bn=bn(next(keys), c_half)) for _ in range(levels - 1)],
        up=[dict(w=conv_w(next(keys), c_half, in_channels, 1, 1),
                 bn=bn(next(keys), c_half)) for _ in range(levels - 1)],
    )
    return raw


def _fold_bn(bn, eps=1e-5):
    scale = bn["gamma"] / jnp.sqrt(bn["var"] + eps)
    shift = bn["beta"] - bn["mean"] * scale
    return scale, shift


def prepare_pallas_params(raw, levels, compute_dtype=jnp.bfloat16):
    c_half = raw["in_conv"]["w"].shape[0]
    f32 = jnp.float32

    s, b = _fold_bn(raw["in_conv"]["bn"])
    in_w = (raw["in_conv"]["w"][:, :, 0, 0] * s[:, None]).astype(compute_dtype)
    in_shift = b[:, None].astype(f32)

    dn_w, dn_shift, up_wt, up_wb, up_shift = [], [], [], [], []
    for l in range(levels - 1):
        s, b = _fold_bn(raw["down"][l]["bn"])
        w = raw["down"][l]["w"] * s[:, None, None, None]          # (Ch, Ch, 2, 2)
        # tap-fused K = 4*Ch layout: columns [t*Ch:(t+1)*Ch] hold tap t = 2*kh+kw
        dn_w.append(jnp.concatenate(
            [w[:, :, 0, 0], w[:, :, 0, 1], w[:, :, 1, 0], w[:, :, 1, 1]], axis=1))
        dn_shift.append(b[:, None])

        s, b = _fold_bn(raw["up"][l]["bn"])
        w = raw["up"][l]["w"][:, :, 0, 0] * s[:, None]            # (Ch, 2*Ch)
        up_wt.append(w[:, :c_half])                               # applied to popped feat
        up_wb.append(w[:, c_half:])                               # applied to x branch
        up_shift.append(b[:, None])

    return dict(in_w=in_w, in_shift=in_shift,
                dn_w=jnp.stack(dn_w).astype(compute_dtype),
                dn_shift=jnp.stack(dn_shift).astype(f32),
                up_wt=jnp.stack(up_wt).astype(compute_dtype),
                up_wb=jnp.stack(up_wb).astype(compute_dtype),
                up_shift=jnp.stack(up_shift).astype(f32))


# ---------------------------------------------------------------------------
# Pure-JAX reference (straightforward NCHW math) for the correctness check
# ---------------------------------------------------------------------------
def weight_mapper_reference(x_nchw, raw, levels):
    eps = 1e-5

    def bn_relu(y, bn):
        s = bn["gamma"] / jnp.sqrt(bn["var"] + eps)
        sh = bn["beta"] - bn["mean"] * s
        return jnp.maximum(y * s[None, :, None, None] + sh[None, :, None, None], 0.0)

    def conv1x1(x, w):
        return jnp.einsum('oi,bihw->bohw', w[:, :, 0, 0], x)

    def conv2x2s2(x, w):
        B, C, H, W = x.shape
        xp = x.reshape(B, C, H // 2, 2, W // 2, 2)
        return jnp.einsum('ocuv,bchuwv->bohw', w, xp)

    def up2(x):
        return jnp.repeat(jnp.repeat(x, 2, axis=2), 2, axis=3)

    x = bn_relu(conv1x1(x_nchw, raw["in_conv"]["w"]), raw["in_conv"]["bn"])
    feat = [x]
    for l in range(levels - 1):
        feat.append(bn_relu(conv2x2s2(feat[-1], raw["down"][l]["w"]),
                            raw["down"][l]["bn"]))
    deepest = feat[-1]
    if deepest.shape[-2:] != (1, 1):
        x = jnp.broadcast_to(jnp.mean(deepest, axis=(2, 3), keepdims=True),
                             deepest.shape)
    else:
        x = deepest
    for l in range(levels - 2, -1, -1):
        top = feat.pop(-1)
        x = jnp.concatenate([top, x], axis=1)
        x = bn_relu(conv1x1(x, raw["up"][l]["w"]), raw["up"][l]["bn"])
        x = up2(x)                      # exact 2x nearest (sizes are powers of 2)
    x = jnp.concatenate([feat.pop(-1), x], axis=1)
    return x


# ---------------------------------------------------------------------------
if __name__ == "__main__":
    key = jax.random.PRNGKey(0)
    kx, kp = jax.random.split(key)

    B, C, H, W = 4, 8, 16, 16            # in_channels=8 (even), 16x16, levels=3
    LEVELS = 3
    x = jax.random.normal(kx, (B, C, H, W), jnp.float32)

    raw = init_weight_mapper_params(kp, C, LEVELS)
    ref = jax.block_until_ready(weight_mapper_reference(x, raw, LEVELS))

    # 1) f32 path, un-coalesced batch (bblk=1, grid=4): tight numerical check
    #    of the restructured pipeline (transpose layout, K-fused down conv,
    #    W_bot-before-replication, early partial output stores).
    pp32 = prepare_pallas_params(raw, LEVELS, jnp.float32)
    fwd32 = jax.jit(functools.partial(weight_mapper_forward, levels=LEVELS, bblk=1))
    out32 = jax.block_until_ready(fwd32(x, pp32))
    assert out32.shape == (B, C, H, W), out32.shape
    np.testing.assert_allclose(np.asarray(out32), np.asarray(ref),
                               rtol=1e-4, atol=1e-5)

    # 2) Performance-default path: bf16 streaming + auto batch coalescing
    #    (bblk=2 here -> grid=2, lane[0]=512).  bf16 operands, f32 accumulation.
    ppbf = prepare_pallas_params(raw, LEVELS, jnp.bfloat16)
    fwdbf = jax.jit(functools.partial(weight_mapper_forward, levels=LEVELS))
    outbf = jax.block_until_ready(fwdbf(x, ppbf))
    assert outbf.shape == (B, C, H, W), outbf.shape
    np.testing.assert_allclose(np.asarray(outbf), np.asarray(ref),
                               rtol=3e-2, atol=3e-2)

    print("KERNEL_OK")
</pallas_src>

<mosaic_0001>
module attributes {stable_mosaic.version = 11 : i64} {
  func.func @kernel(%arg0: i32, %arg1: memref<1x8x256xf32, #tpu.memory_space<vmem>>, %arg2: memref<4x8xf32, #tpu.memory_space<vmem>>, %arg3: memref<4x1xf32, #tpu.memory_space<vmem>>, %arg4: memref<2x4x16xf32, #tpu.memory_space<vmem>>, %arg5: memref<2x4x1xf32, #tpu.memory_space<vmem>>, %arg6: memref<2x4x4xf32, #tpu.memory_space<vmem>>, %arg7: memref<2x4x4xf32, #tpu.memory_space<vmem>>, %arg8: memref<2x4x1xf32, #tpu.memory_space<vmem>>, %arg9: memref<16x1xf32, #tpu.memory_space<vmem>>, %arg10: memref<1x16xf32, #tpu.memory_space<vmem>>, %arg11: memref<1x8x256xf32, #tpu.memory_space<vmem>>) attributes {dimension_semantics = [#tpu.dimension_semantics<parallel>], iteration_bounds = array<i64: 4>, scalar_prefetch = 0 : i64, scratch_operands = 0 : i64, tpu.core_type = #tpu.core_type<tc>, window_params = [{transform_indices = @transform_0, window_bounds = array<i64: 1, 8, 256>}, {pipeline_mode = #tpu.pipeline_mode<synchronous>, transform_indices = @transform_1, window_bounds = array<i64: 4, 8>}, {pipeline_mode = #tpu.pipeline_mode<synchronous>, transform_indices = @transform_2, window_bounds = array<i64: 4, 1>}, {pipeline_mode = #tpu.pipeline_mode<synchronous>, transform_indices = @transform_3, window_bounds = array<i64: 2, 4, 16>}, {pipeline_mode = #tpu.pipeline_mode<synchronous>, transform_indices = @transform_4, window_bounds = array<i64: 2, 4, 1>}, {pipeline_mode = #tpu.pipeline_mode<synchronous>, transform_indices = @transform_5, window_bounds = array<i64: 2, 4, 4>}, {pipeline_mode = #tpu.pipeline_mode<synchronous>, transform_indices = @transform_6, window_bounds = array<i64: 2, 4, 4>}, {pipeline_mode = #tpu.pipeline_mode<synchronous>, transform_indices = @transform_7, window_bounds = array<i64: 2, 4, 1>}, {pipeline_mode = #tpu.pipeline_mode<synchronous>, transform_indices = @transform_8, window_bounds = array<i64: 16, 1>}, {pipeline_mode = #tpu.pipeline_mode<synchronous>, transform_indices = @transform_9, window_bounds = array<i64: 1, 16>}, {transform_indices = @transform_10, window_bounds = array<i64: 1, 8, 256>}]} {
    %c0 = arith.constant 0 : index
    %c0_0 = arith.constant 0 : index
    %c0_1 = arith.constant 0 : index
    %0 = vector.load %arg1[%c0, %c0_0, %c0_1] : memref<1x8x256xf32, #tpu.memory_space<vmem>>, vector<1x8x256xf32>
    %1 = vector.shape_cast %0 : vector<1x8x256xf32> to vector<8x256xf32>
    %c0_2 = arith.constant 0 : index
    %c0_3 = arith.constant 0 : index
    %2 = vector.load %arg2[%c0_2, %c0_3] : memref<4x8xf32, #tpu.memory_space<vmem>>, vector<4x8xf32>
    %cst = arith.constant dense<0.000000e+00> : vector<4x256xf32>
    %3 = tpu.matmul %2, %1, %cst {dimension_numbers = #tpu.dot_dimension_numbers<[1], [0], [0], [1], [0, 0, 1, 1], [], []>} : vector<4x8xf32>, vector<8x256xf32>, vector<4x256xf32> -> vector<4x256xf32>
    %c0_4 = arith.constant 0 : index
    %c0_5 = arith.constant 0 : index
    %4 = vector.load %arg3[%c0_4, %c0_5] : memref<4x1xf32, #tpu.memory_space<vmem>>, vector<4x1xf32>
    %5 = vector.broadcast %4 : vector<4x1xf32> to vector<4x256xf32>
    %6 = arith.addf %3, %5 : vector<4x256xf32>
    %cst_6 = arith.constant 0.000000e+00 : f32
    %7 = vector.broadcast %cst_6 : f32 to vector<4x256xf32>
    %8 = arith.maximumf %6, %7 : vector<4x256xf32>
    %c0_7 = arith.constant 0 : index
    %c0_8 = arith.constant 0 : index
    %c0_9 = arith.constant 0 : index
    %9 = vector.load %arg11[%c0_7, %c0_8, %c0_9] : memref<1x8x256xf32, #tpu.memory_space<vmem>>, vector<1x4x256xf32>
    %10 = vector.shape_cast %9 : vector<1x4x256xf32> to vector<4x256xf32>
    %11 = vector.shape_cast %8 : vector<4x256xf32> to vector<1x4x256xf32>
    tpu.vector_store %arg11[%c0_7, %c0_8, %c0_9], %11 {strides = array<i32>} : memref<1x8x256xf32, #tpu.memory_space<vmem>>, vector<1x4x256xf32>,
    %12 = vector.extract_strided_slice %8 {offsets = [0, 0], sizes = [4, 64], strides = [1, 1]} : vector<4x256xf32> to vector<4x64xf32>
    %13 = vector.extract_strided_slice %8 {offsets = [0, 64], sizes = [4, 64], strides = [1, 1]} : vector<4x256xf32> to vector<4x64xf32>
    %14 = vector.extract_strided_slice %8 {offsets = [0, 128], sizes = [4, 64], strides = [1, 1]} : vector<4x256xf32> to vector<4x64xf32>
    %15 = vector.extract_strided_slice %8 {offsets = [0, 192], sizes = [4, 64], strides = [1, 1]} : vector<4x256xf32> to vector<4x64xf32>
    %16 = tpu.concatenate %12, %13, %14, %15 in 0 : vector<4x64xf32>, vector<4x64xf32>, vector<4x64xf32>, vector<4x64xf32> -> vector<16x64xf32>
    %c0_10 = arith.constant 0 : index
    %c0_11 = arith.constant 0 : index
    %c0_12 = arith.constant 0 : index
    %17 = vector.load %arg4[%c0_10, %c0_11, %c0_12] : memref<2x4x16xf32, #tpu.memory_space<vmem>>, vector<1x4x16xf32>
    %18 = vector.shape_cast %17 : vector<1x4x16xf32> to vector<4x16xf32>
    %cst_13 = arith.constant dense<0.000000e+00> : vector<4x64xf32>
    %19 = tpu.matmul %18, %16, %cst_13 {dimension_numbers = #tpu.dot_dimension_numbers<[1], [0], [0], [1], [0, 0, 1, 1], [], []>} : vector<4x16xf32>, vector<16x64xf32>, vector<4x64xf32> -> vector<4x64xf32>
    %c0_14 = arith.constant 0 : index
    %c0_15 = arith.constant 0 : index
    %c0_16 = arith.constant 0 : index
    %20 = vector.load %arg5[%c0_14, %c0_15, %c0_16] : memref<2x4x1xf32, #tpu.memory_space<vmem>>, vector<1x4x1xf32>
    %21 = vector.shape_cast %20 : vector<1x4x1xf32> to vector<4x1xf32>
    %22 = vector.broadcast %21 : vector<4x1xf32> to vector<4x64xf32>
    %23 = arith.addf %19, %22 : vector<4x64xf32>
    %cst_17 = arith.constant 0.000000e+00 : f32
    %24 = vector.broadcast %cst_17 : f32 to vector<4x64xf32>
    %25 = arith.maximumf %23, %24 : vector<4x64xf32>
    %26 = vector.extract_strided_slice %25 {offsets = [0, 0], sizes = [4, 16], strides = [1, 1]} : vector<4x64xf32> to vector<4x16xf32>
    %27 = vector.extract_strided_slice %25 {offsets = [0, 16], sizes = [4, 16], strides = [1, 1]} : vector<4x64xf32> to vector<4x16xf32>
    %28 = vector.extract_strided_slice %25 {offsets = [0, 32], sizes = [4, 16], strides = [1, 1]} : vector<4x64xf32> to vector<4x16xf32>
    %29 = vector.extract_strided_slice %25 {offsets = [0, 48], sizes = [4, 16], strides = [1, 1]} : vector<4x64xf32> to vector<4x16xf32>
    %30 = tpu.concatenate %26, %27, %28, %29 in 0 : vector<4x16xf32>, vector<4x16xf32>, vector<4x16xf32>, vector<4x16xf32> -> vector<16x16xf32>
    %c1 = arith.constant 1 : index
    %c0_18 = arith.constant 0 : index
    %c0_19 = arith.constant 0 : index
    %31 = vector.load %arg4[%c1, %c0_18, %c0_19] : memref<2x4x16xf32, #tpu.memory_space<vmem>>, vector<1x4x16xf32>
    %32 = vector.shape_cast %31 : vector<1x4x16xf32> to vector<4x16xf32>
    %cst_20 = arith.constant dense<0.000000e+00> : vector<4x16xf32>
    %33 = tpu.matmul %32, %30, %cst_20 {dimension_numbers = #tpu.dot_dimension_numbers<[1], [0], [0], [1], [0, 0, 1, 1], [], []>} : vector<4x16xf32>, vector<16x16xf32>, vector<4x16xf32> -> vector<4x16xf32>
    %c1_21 = arith.constant 1 : index
    %c0_22 = arith.constant 0 : index
    %c0_23 = arith.constant 0 : index
    %34 = vector.load %arg5[%c1_21, %c0_22, %c0_23] : memref<2x4x1xf32, #tpu.memory_space<vmem>>, vector<1x4x1xf32>
    %35 = vector.shape_cast %34 : vector<1x4x1xf32> to vector<4x1xf32>
    %36 = vector.broadcast %35 : vector<4x1xf32> to vector<4x16xf32>
    %37 = arith.addf %33, %36 : vector<4x16xf32>
    %cst_24 = arith.constant 0.000000e+00 : f32
    %38 = vector.broadcast %cst_24 : f32 to vector<4x16xf32>
    %39 = arith.maximumf %37, %38 : vector<4x16xf32>
    %c0_25 = arith.constant 0 : index
    %c0_26 = arith.constant 0 : index
    %40 = vector.load %arg9[%c0_25, %c0_26] : memref<16x1xf32, #tpu.memory_space<vmem>>, vector<16x1xf32>
    %cst_27 = arith.constant dense<0.000000e+00> : vector<4x1xf32>
    %41 = tpu.matmul %39, %40, %cst_27 {dimension_numbers = #tpu.dot_dimension_numbers<[1], [0], [0], [1], [0, 0, 1, 1], [], []>} : vector<4x16xf32>, vector<16x1xf32>, vector<4x1xf32> -> vector<4x1xf32>
    %cst_28 = arith.constant 6.250000e-02 : f32
    %42 = vector.broadcast %cst_28 : f32 to vector<4x1xf32>
    %43 = arith.mulf %41, %42 : vector<4x1xf32>
    %c1_29 = arith.constant 1 : index
    %c0_30 = arith.constant 0 : index
    %c0_31 = arith.constant 0 : index
    %44 = vector.load %arg7[%c1_29, %c0_30, %c0_31] : memref<2x4x4xf32, #tpu.memory_space<vmem>>, vector<1x4x4xf32>
    %45 = vector.shape_cast %44 : vector<1x4x4xf32> to vector<4x4xf32>
    %cst_32 = arith.constant dense<0.000000e+00> : vector<4x1xf32>
    %46 = tpu.matmul %45, %43, %cst_32 {dimension_numbers = #tpu.dot_dimension_numbers<[1], [0], [0], [1], [0, 0, 1, 1], [], []>} : vector<4x4xf32>, vector<4x1xf32>, vector<4x1xf32> -> vector<4x1xf32>
    %c1_33 = arith.constant 1 : index
    %c0_34 = arith.constant 0 : index
    %c0_35 = arith.constant 0 : index
    %47 = vector.load %arg6[%c1_33, %c0_34, %c0_35] : memref<2x4x4xf32, #tpu.memory_space<vmem>>, vector<1x4x4xf32>
    %48 = vector.shape_cast %47 : vector<1x4x4xf32> to vector<4x4xf32>
    %cst_36 = arith.constant dense<0.000000e+00> : vector<4x16xf32>
    %49 = tpu.matmul %48, %39, %cst_36 {dimension_numbers = #tpu.dot_dimension_numbers<[1], [0], [0], [1], [0, 0, 1, 1], [], []>} : vector<4x4xf32>, vector<4x16xf32>, vector<4x16xf32> -> vector<4x16xf32>
    %50 = vector.broadcast %46 : vector<4x1xf32> to vector<4x16xf32>
    %51 = arith.addf %49, %50 : vector<4x16xf32>
    %c1_37 = arith.constant 1 : index
    %c0_38 = arith.constant 0 : index
    %c0_39 = arith.constant 0 : index
    %52 = vector.load %arg8[%c1_37, %c0_38, %c0_39] : memref<2x4x1xf32, #tpu.memory_space<vmem>>, vector<1x4x1xf32>
    %53 = vector.shape_cast %52 : vector<1x4x1xf32> to vector<4x1xf32>
    %54 = vector.broadcast %53 : vector<4x1xf32> to vector<4x16xf32>
    %55 = arith.addf %51, %54 : vector<4x16xf32>
    %cst_40 = arith.constant 0.000000e+00 : f32
    %56 = vector.broadcast %cst_40 : f32 to vector<4x16xf32>
    %57 = arith.maximumf %55, %56 : vector<4x16xf32>
    %c0_41 = arith.constant 0 : index
    %c0_42 = arith.constant 0 : index
    %c0_43 = arith.constant 0 : index
    %58 = vector.load %arg7[%c0_41, %c0_42, %c0_43] : memref<2x4x4xf32, #tpu.memory_space<vmem>>, vector<1x4x4xf32>
    %59 = vector.shape_cast %58 : vector<1x4x4xf32> to vector<4x4xf32>
    %cst_44 = arith.constant dense<0.000000e+00> : vector<4x16xf32>
    %60 = tpu.matmul %59, %57, %cst_44 {dimension_numbers = #tpu.dot_dimension_numbers<[1], [0], [0], [1], [0, 0, 1, 1], [], []>} : vector<4x4xf32>, vector<4x16xf32>, vector<4x16xf32> -> vector<4x16xf32>
    %61 = tpu.concatenate %60, %60, %60, %60 in 1 : vector<4x16xf32>, vector<4x16xf32>, vector<4x16xf32>, vector<4x16xf32> -> vector<4x64xf32>
    %c0_45 = arith.constant 0 : index
    %c0_46 = arith.constant 0 : index
    %c0_47 = arith.constant 0 : index
    %62 = vector.load %arg6[%c0_45, %c0_46, %c0_47] : memref<2x4x4xf32, #tpu.memory_space<vmem>>, vector<1x4x4xf32>
    %63 = vector.shape_cast %62 : vector<1x4x4xf32> to vector<4x4xf32>
    %cst_48 = arith.constant dense<0.000000e+00> : vector<4x64xf32>
    %64 = tpu.matmul %63, %25, %cst_48 {dimension_numbers = #tpu.dot_dimension_numbers<[1], [0], [0], [1], [0, 0, 1, 1], [], []>} : vector<4x4xf32>, vector<4x64xf32>, vector<4x64xf32> -> vector<4x64xf32>
    %65 = arith.addf %64, %61 : vector<4x64xf32>
    %c0_49 = arith.constant 0 : index
    %c0_50 = arith.constant 0 : index
    %c0_51 = arith.constant 0 : index
    %66 = vector.load %arg8[%c0_49, %c0_50, %c0_51] : memref<2x4x1xf32, #tpu.memory_space<vmem>>, vector<1x4x1xf32>
    %67 = vector.shape_cast %66 : vector<1x4x1xf32> to vector<4x1xf32>
    %68 = vector.broadcast %67 : vector<4x1xf32> to vector<4x64xf32>
    %69 = arith.addf %65, %68 : vector<4x64xf32>
    %cst_52 = arith.constant 0.000000e+00 : f32
    %70 = vector.broadcast %cst_52 : f32 to vector<4x64xf32>
    %71 = arith.maximumf %69, %70 : vector<4x64xf32>
    %72 = tpu.concatenate %71, %71, %71, %71 in 1 : vector<4x64xf32>, vector<4x64xf32>, vector<4x64xf32>, vector<4x64xf32> -> vector<4x256xf32>
    %c0_53 = arith.constant 0 : index
    %c4 = arith.constant 4 : index
    %c0_54 = arith.constant 0 : index
    %73 = vector.load %arg11[%c0_53, %c4, %c0_54] : memref<1x8x256xf32, #tpu.memory_space<vmem>>, vector<1x4x256xf32>
    %74 = vector.shape_cast %73 : vector<1x4x256xf32> to vector<4x256xf32>
    %75 = vector.shape_cast %72 : vector<4x256xf32> to vector<1x4x256xf32>
    tpu.vector_store %arg11[%c0_53, %c4, %c0_54], %75 {strides = array<i32>} : memref<1x8x256xf32, #tpu.memory_space<vmem>>, vector<1x4x256xf32>,
    return
  }
  func.func @transform_0(%arg0: i32) -> (i32, i32, i32) {
    %c0_i32 = arith.constant 0 : i32
    %c0_i32_0 = arith.constant 0 : i32
    %c0_i32_1 = arith.constant 0 : i32
    return %arg0, %c0_i32, %c0_i32_0 : i32, i32, i32
  }
  func.func @transform_1(%arg0: i32) -> (i32, i32) {
    %c0_i32 = arith.constant 0 : i32
    %c0_i32_0 = arith.constant 0 : i32
    %c0_i32_1 = arith.constant 0 : i32
    return %c0_i32, %c0_i32_0 : i32, i32
  }
  func.func @transform_2(%arg0: i32) -> (i32, i32) {
    %c0_i32 = arith.constant 0 : i32
    %c0_i32_0 = arith.constant 0 : i32
    %c0_i32_1 = arith.constant 0 : i32
    return %c0_i32, %c0_i32_0 : i32, i32
  }
  func.func @transform_3(%arg0: i32) -> (i32, i32, i32) {
    %c0_i32 = arith.constant 0 : i32
    %c0_i32_0 = arith.constant 0 : i32
    %c0_i32_1 = arith.constant 0 : i32
    %c0_i32_2 = arith.constant 0 : i32
    return %c0_i32, %c0_i32_0, %c0_i32_1 : i32, i32, i32
  }
  func.func @transform_4(%arg0: i32) -> (i32, i32, i32) {
    %c0_i32 = arith.constant 0 : i32
    %c0_i32_0 = arith.constant 0 : i32
    %c0_i32_1 = arith.constant 0 : i32
    %c0_i32_2 = arith.constant 0 : i32
    return %c0_i32, %c0_i32_0, %c0_i32_1 : i32, i32, i32
  }
  func.func @transform_5(%arg0: i32) -> (i32, i32, i32) {
    %c0_i32 = arith.constant 0 : i32
    %c0_i32_0 = arith.constant 0 : i32
    %c0_i32_1 = arith.constant 0 : i32
    %c0_i32_2 = arith.constant 0 : i32
    return %c0_i32, %c0_i32_0, %c0_i32_1 : i32, i32, i32
  }
  func.func @transform_6(%arg0: i32) -> (i32, i32, i32) {
    %c0_i32 = arith.constant 0 : i32
    %c0_i32_0 = arith.constant 0 : i32
    %c0_i32_1 = arith.constant 0 : i32
    %c0_i32_2 = arith.constant 0 : i32
    return %c0_i32, %c0_i32_0, %c0_i32_1 : i32, i32, i32
  }
  func.func @transform_7(%arg0: i32) -> (i32, i32, i32) {
    %c0_i32 = arith.constant 0 : i32
    %c0_i32_0 = arith.constant 0 : i32
    %c0_i32_1 = arith.constant 0 : i32
    %c0_i32_2 = arith.constant 0 : i32
    return %c0_i32, %c0_i32_0, %c0_i32_1 : i32, i32, i32
  }
  func.func @transform_8(%arg0: i32) -> (i32, i32) {
    %c0_i32 = arith.constant 0 : i32
    %c0_i32_0 = arith.constant 0 : i32
    %c0_i32_1 = arith.constant 0 : i32
    return %c0_i32, %c0_i32_0 : i32, i32
  }
  func.func @transform_9(%arg0: i32) -> (i32, i32) {
    %c0_i32 = arith.constant 0 : i32
    %c0_i32_0 = arith.constant 0 : i32
    %c0_i32_1 = arith.constant 0 : i32
    return %c0_i32, %c0_i32_0 : i32, i32
  }
  func.func @transform_10(%arg0: i32) -> (i32, i32, i32) {
    %c0_i32 = arith.constant 0 : i32
    %c0_i32_0 = arith.constant 0 : i32
    %c0_i32_1 = arith.constant 0 : i32
    return %arg0, %c0_i32, %c0_i32_0 : i32, i32, i32
  }
}

</mosaic_0001>

<llo_original>
// kernel: weight_mapper_forward.1
$region0: #{weight_mapper_forward.1}
  #allocation0 [shape = 'u32[]', space=smem, size = 0x4, offset = 0x4, fixed_abs, tag = 'smem constant byte address 0x4 - core index']
  #allocation1 [shape = 'u32[144,128]{1,0:T(1,128)}', space=vmem, size = 0x12000, scoped, tag = 'internal scratch']
  %s0 = inlined_call_operand.vmem [shape: f32[4,8,256], index: 0, kind: input, shape index: {}]
  %s1 = inlined_call_operand.vmem [shape: f32[4,8], index: 1, kind: input, shape index: {}]
  %s2 = inlined_call_operand.vmem [shape: f32[4,1], index: 2, kind: input, shape index: {}]
  %s3 = inlined_call_operand.vmem [shape: f32[2,4,16], index: 3, kind: input, shape index: {}]
  %s4 = inlined_call_operand.vmem [shape: f32[2,4,1], index: 4, kind: input, shape index: {}]
  %s5 = inlined_call_operand.vmem [shape: f32[2,4,4], index: 5, kind: input, shape index: {}]
  %s6 = inlined_call_operand.vmem [shape: f32[2,4,4], index: 6, kind: input, shape index: {}]
  %s7 = inlined_call_operand.vmem [shape: f32[2,4,1], index: 7, kind: input, shape index: {}]
  %s8 = inlined_call_operand.vmem [shape: f32[16,1], index: 8, kind: input, shape index: {}]
  %s9 = inlined_call_operand.vmem [shape: f32[1,16], index: 9, kind: input, shape index: {}]
  %s10 = inlined_call_operand.vmem [shape: f32[4,8,256], index: 10, kind: output, shape index: {}]
  %s11 = sld [smem:[#allocation0]]
  $region73: #{weight_mapper_forward.1} parent=0
    _
  %s13 = ssub.s32 1, %s11
  %s14 = scalar_select 0, %s13, %s11
  loop: start=0, step=1, limit=6
  $region2: #{weight_mapper_forward.1} parent=0 // loop_pre_header
    _
  $region3: #{weight_mapper_forward.1} parent=0 // loop_header
    %s16 = sphi 0, %s20
    %p17 = scmp.ge.s32.totalorder %s16, 6
    %s26 = sphi 0, %s28
    %s29 = sphi 0, %s26
    %s30 = sphi 0, %s29
    %s46 = sphi 0, %s30
    %s50 = sphi 0, %s50
    %s52 = sphi 0, %s50
    %s53 = sphi 0, %s52
    %s67 = sphi 0, %s53
    %s71 = sphi 0, %s71
    %s73 = sphi 0, %s71
    %s74 = sphi 0, %s73
    %s88 = sphi 0, %s74
    %s92 = sphi 0, %s92
    %s94 = sphi 0, %s92
    %s95 = sphi 0, %s94
    %s109 = sphi 0, %s95
    %s113 = sphi 0, %s113
    %s115 = sphi 0, %s113
    %s116 = sphi 0, %s115
    %s130 = sphi 0, %s116
    %s134 = sphi 0, %s134
    %s136 = sphi 0, %s134
    %s137 = sphi 0, %s136
    %s151 = sphi 0, %s137
    %s155 = sphi 0, %s155
    %s157 = sphi 0, %s155
    %s158 = sphi 0, %s157
    %s172 = sphi 0, %s158
    %s176 = sphi 0, %s176
    %s178 = sphi 0, %s176
    %s179 = sphi 0, %s178
    %s193 = sphi 0, %s179
    %s197 = sphi 0, %s197
    %s199 = sphi 0, %s197
    %s200 = sphi 0, %s199
    %s214 = sphi 0, %s200
    %s218 = sphi 0, %s218
    %s220 = sphi 0, %s218
    %s221 = sphi 0, %s220
    %s235 = sphi 0, %s221
    %s241 = sphi 0, %s243
    %s244 = sphi 0, %s241
    %s245 = sphi 0, %s244
    %s261 = sphi 0, %s245
  $region4: #{weight_mapper_forward.1} parent=0 // loop_header_branch
    %19 = sbr.rel (%p17) target = $region8
  $region5: #{weight_mapper_forward.1} parent=0 // loop_body
    %s21 = ssub.s32 %s16, 1
    %s22 = ssub.s32 %s16, 2
    %s23 = sadd.s32 %s16, 1
    %s24 = ssub.s32 %s16, %s23
    %p25 = scmp.eq.s32.totalorder %s24, 0
    %s27 = sadd.s32 %s26, 1
    %s28 = scalar_select %p25, %s26, %s27
    %p31 = pneg %p25
    %p32 = scmp.eq.s32.totalorder %s16, 3
    %p33 = por %p31, %p32
    %p34 = scmp.ne.s32.totalorder %s26, %s29
    %p35 = scmp.eq.s32.totalorder %s16, 0
    %p36 = por %p34, %p35
    %p37 = scmp.ne.s32.totalorder %s26, %s29
    %p38 = scmp.eq.s32.totalorder %s21, 3
    %p39 = por %p37, %p38
    %p40 = scmp.ne.s32.totalorder %s29, %s30
    %p41 = scmp.eq.s32.totalorder %s21, 0
    %p42 = por %p40, %p41
    %p43 = scmp.ne.s32.totalorder %s29, %s30
    %p44 = scmp.eq.s32.totalorder %s22, 3
    %p45 = por %p43, %p44
    %p47 = scmp.ne.s32.totalorder %s30, %s46
    %p48 = scmp.eq.s32.totalorder %s22, 0
    %p49 = por %p47, %p48
    %s51 = sadd.s32 %s50, 1
    %p54 = scmp.eq.s32.totalorder %s16, 3
    %p55 = scmp.ne.s32.totalorder %s50, %s52
    %p56 = scmp.eq.s32.totalorder %s16, 0
    %p57 = por %p55, %p56
    %p58 = scmp.ne.s32.totalorder %s50, %s52
    %p59 = scmp.eq.s32.totalorder %s21, 3
    %p60 = por %p58, %p59
    %p61 = scmp.ne.s32.totalorder %s52, %s53
    %p62 = scmp.eq.s32.totalorder %s21, 0
    %p63 = por %p61, %p62
    %p64 = scmp.ne.s32.totalorder %s52, %s53
    %p65 = scmp.eq.s32.totalorder %s22, 3
    %p66 = por %p64, %p65
    %p68 = scmp.ne.s32.totalorder %s53, %s67
    %p69 = scmp.eq.s32.totalorder %s22, 0
    %p70 = por %p68, %p69
    %s72 = sadd.s32 %s71, 1
    %p75 = scmp.eq.s32.totalorder %s16, 3
    %p76 = scmp.ne.s32.totalorder %s71, %s73
    %p77 = scmp.eq.s32.totalorder %s16, 0
    %p78 = por %p76, %p77
    %p79 = scmp.ne.s32.totalorder %s71, %s73
    %p80 = scmp.eq.s32.totalorder %s21, 3
    %p81 = por %p79, %p80
    %p82 = scmp.ne.s32.totalorder %s73, %s74
    %p83 = scmp.eq.s32.totalorder %s21, 0
    %p84 = por %p82, %p83
    %p85 = scmp.ne.s32.totalorder %s73, %s74
    %p86 = scmp.eq.s32.totalorder %s22, 3
    %p87 = por %p85, %p86
    %p89 = scmp.ne.s32.totalorder %s74, %s88
    %p90 = scmp.eq.s32.totalorder %s22, 0
    %p91 = por %p89, %p90
    %s93 = sadd.s32 %s92, 1
    %p96 = scmp.eq.s32.totalorder %s16, 3
    %p97 = scmp.ne.s32.totalorder %s92, %s94
    %p98 = scmp.eq.s32.totalorder %s16, 0
    %p99 = por %p97, %p98
    %p100 = scmp.ne.s32.totalorder %s92, %s94
    %p101 = scmp.eq.s32.totalorder %s21, 3
    %p102 = por %p100, %p101
    %p103 = scmp.ne.s32.totalorder %s94, %s95
    %p104 = scmp.eq.s32.totalorder %s21, 0
    %p105 = por %p103, %p104
    %p106 = scmp.ne.s32.totalorder %s94, %s95
    %p107 = scmp.eq.s32.totalorder %s22, 3
    %p108 = por %p106, %p107
    %p110 = scmp.ne.s32.totalorder %s95, %s109
    %p111 = scmp.eq.s32.totalorder %s22, 0
    %p112 = por %p110, %p111
    %s114 = sadd.s32 %s113, 1
    %p117 = scmp.eq.s32.totalorder %s16, 3
    %p118 = scmp.ne.s32.totalorder %s113, %s115
    %p119 = scmp.eq.s32.totalorder %s16, 0
    %p120 = por %p118, %p119
    %p121 = scmp.ne.s32.totalorder %s113, %s115
    %p122 = scmp.eq.s32.totalorder %s21, 3
    %p123 = por %p121, %p122
    %p124 = scmp.ne.s32.totalorder %s115, %s116
    %p125 = scmp.eq.s32.totalorder %s21, 0
    %p126 = por %p124, %p125
    %p127 = scmp.ne.s32.totalorder %s115, %s116
    %p128 = scmp.eq.s32.totalorder %s22, 3
    %p129 = por %p127, %p128
    %p131 = scmp.ne.s32.totalorder %s116, %s130
    %p132 = scmp.eq.s32.totalorder %s22, 0
    %p133 = por %p131, %p132
    %s135 = sadd.s32 %s134, 1
    %p138 = scmp.eq.s32.totalorder %s16, 3
    %p139 = scmp.ne.s32.totalorder %s134, %s136
    %p140 = scmp.eq.s32.totalorder %s16, 0
    %p141 = por %p139, %p140
    %p142 = scmp.ne.s32.totalorder %s134, %s136
    %p143 = scmp.eq.s32.totalorder %s21, 3
    %p144 = por %p142, %p143
    %p145 = scmp.ne.s32.totalorder %s136, %s137
    %p146 = scmp.eq.s32.totalorder %s21, 0
    %p147 = por %p145, %p146
    %p148 = scmp.ne.s32.totalorder %s136, %s137
    %p149 = scmp.eq.s32.totalorder %s22, 3
    %p150 = por %p148, %p149
    %p152 = scmp.ne.s32.totalorder %s137, %s151
    %p153 = scmp.eq.s32.totalorder %s22, 0
    %p154 = por %p152, %p153
    %s156 = sadd.s32 %s155, 1
    %p159 = scmp.eq.s32.totalorder %s16, 3
    %p160 = scmp.ne.s32.totalorder %s155, %s157
    %p161 = scmp.eq.s32.totalorder %s16, 0
    %p162 = por %p160, %p161
    %p163 = scmp.ne.s32.totalorder %s155, %s157
    %p164 = scmp.eq.s32.totalorder %s21, 3
    %p165 = por %p163, %p164
    %p166 = scmp.ne.s32.totalorder %s157, %s158
    %p167 = scmp.eq.s32.totalorder %s21, 0
    %p168 = por %p166, %p167
    %p169 = scmp.ne.s32.totalorder %s157, %s158
    %p170 = scmp.eq.s32.totalorder %s22, 3
    %p171 = por %p169, %p170
    %p173 = scmp.ne.s32.totalorder %s158, %s172
    %p174 = scmp.eq.s32.totalorder %s22, 0
    %p175 = por %p173, %p174
    %s177 = sadd.s32 %s176, 1
    %p180 = scmp.eq.s32.totalorder %s16, 3
    %p181 = scmp.ne.s32.totalorder %s176, %s178
    %p182 = scmp.eq.s32.totalorder %s16, 0
    %p183 = por %p181, %p182
    %p184 = scmp.ne.s32.totalorder %s176, %s178
    %p185 = scmp.eq.s32.totalorder %s21, 3
    %p186 = por %p184, %p185
    %p187 = scmp.ne.s32.totalorder %s178, %s179
    %p188 = scmp.eq.s32.totalorder %s21, 0
    %p189 = por %p187, %p188
    %p190 = scmp.ne.s32.totalorder %s178, %s179
    %p191 = scmp.eq.s32.totalorder %s22, 3
    %p192 = por %p190, %p191
    %p194 = scmp.ne.s32.totalorder %s179, %s193
    %p195 = scmp.eq.s32.totalorder %s22, 0
    %p196 = por %p194, %p195
    %s198 = sadd.s32 %s197, 1
    %p201 = scmp.eq.s32.totalorder %s16, 3
    %p202 = scmp.ne.s32.totalorder %s197, %s199
    %p203 = scmp.eq.s32.totalorder %s16, 0
    %p204 = por %p202, %p203
    %p205 = scmp.ne.s32.totalorder %s197, %s199
    %p206 = scmp.eq.s32.totalorder %s21, 3
    %p207 = por %p205, %p206
    %p208 = scmp.ne.s32.totalorder %s199, %s200
    %p209 = scmp.eq.s32.totalorder %s21, 0
    %p210 = por %p208, %p209
    %p211 = scmp.ne.s32.totalorder %s199, %s200
    %p212 = scmp.eq.s32.totalorder %s22, 3
    %p213 = por %p211, %p212
    %p215 = scmp.ne.s32.totalorder %s200, %s214
    %p216 = scmp.eq.s32.totalorder %s22, 0
    %p217 = por %p215, %p216
    %s219 = sadd.s32 %s218, 1
    %p222 = scmp.eq.s32.totalorder %s16, 3
    %p223 = scmp.ne.s32.totalorder %s218, %s220
    %p224 = scmp.eq.s32.totalorder %s16, 0
    %p225 = por %p223, %p224
    %p226 = scmp.ne.s32.totalorder %s218, %s220
    %p227 = scmp.eq.s32.totalorder %s21, 3
    %p228 = por %p226, %p227
    %p229 = scmp.ne.s32.totalorder %s220, %s221
    %p230 = scmp.eq.s32.totalorder %s21, 0
    %p231 = por %p229, %p230
    %p232 = scmp.ne.s32.totalorder %s220, %s221
    %p233 = scmp.eq.s32.totalorder %s22, 3
    %p234 = por %p232, %p233
    %p236 = scmp.ne.s32.totalorder %s221, %s235
    %p237 = scmp.eq.s32.totalorder %s22, 0
    %p238 = por %p236, %p237
    %s239 = ssub.s32 %s16, %s23
    %p240 = scmp.eq.s32.totalorder %s239, 0
    %s242 = sadd.s32 %s241, 1
    %s243 = scalar_select %p240, %s241, %s242
    %p246 = pneg %p240
    %p247 = scmp.eq.s32.totalorder %s16, 3
    %p248 = por %p246, %p247
    %p249 = scmp.ne.s32.totalorder %s241, %s244
    %p250 = scmp.eq.s32.totalorder %s16, 0
    %p251 = por %p249, %p250
    %p252 = scmp.ne.s32.totalorder %s241, %s244
    %p253 = scmp.eq.s32.totalorder %s21, 3
    %p254 = por %p252, %p253
    %p255 = scmp.ne.s32.totalorder %s244, %s245
    %p256 = scmp.eq.s32.totalorder %s21, 0
    %p257 = por %p255, %p256
    %p258 = scmp.ne.s32.totalorder %s244, %s245
    %p259 = scmp.eq.s32.totalorder %s22, 3
    %p260 = por %p258, %p259
    %p262 = scmp.ne.s32.totalorder %s245, %s261
    %p263 = scmp.eq.s32.totalorder %s22, 0
    %p264 = por %p262, %p263
    %p265 = scmp.le.s32.totalorder 1, %s16
    %p266 = scmp.lt.s32.totalorder %s16, 5
    %p267 = pnand %p265, %p266
    %p268 = pneg %p267
    // Predicated region
    $region9: #{weight_mapper_forward.1} parent=5 // pred_check
      _
    $region10: #{weight_mapper_forward.1} parent=5 // pred_check_branch
      %270 = sbr.rel (%p267) target = $region12
    $region11: #{weight_mapper_forward.1} parent=5 // pred_region
      %s271 = ssub.s32 %s16, 1
      // Predicated region
      $region13: #{weight_mapper_forward.1} parent=11 // pred_check
        %p272 = pneg %p63
      $region14: #{weight_mapper_forward.1} parent=11 // pred_check_branch
        %274 = sbr.rel (%p272) target = $region16
      $region15: #{weight_mapper_forward.1} parent=11 // pred_region
        _
      $region16: #{weight_mapper_forward.1} parent=11 // pred_fallthru
        _
      // Predicated region
      $region17: #{weight_mapper_forward.1} parent=11 // pred_check
        %p275 = pneg %p84
      $region18: #{weight_mapper_forward.1} parent=11 // pred_check_branch
        %277 = sbr.rel (%p275) target = $region20
      $region19: #{weight_mapper_forward.1} parent=11 // pred_region
        _
      $region20: #{weight_mapper_forward.1} parent=11 // pred_fallthru
        _
      // Predicated region
      $region21: #{weight_mapper_forward.1} parent=11 // pred_check
        %p278 = pneg %p105
      $region22: #{weight_mapper_forward.1} parent=11 // pred_check_branch
        %280 = sbr.rel (%p278) target = $region24
      $region23: #{weight_mapper_forward.1} parent=11 // pred_region
        _
      $region24: #{weight_mapper_forward.1} parent=11 // pred_fallthru
        _
      // Predicated region
      $region25: #{weight_mapper_forward.1} parent=11 // pred_check
        %p281 = pneg %p126
      $region26: #{weight_mapper_forward.1} parent=11 // pred_check_branch
        %283 = sbr.rel (%p281) target = $region28
      $region27: #{weight_mapper_forward.1} parent=11 // pred_region
        _
      $region28: #{weight_mapper_forward.1} parent=11 // pred_fallthru
        _
      // Predicated region
      $region29: #{weight_mapper_forward.1} parent=11 // pred_check
        %p284 = pneg %p147
      $region30: #{weight_mapper_forward.1} parent=11 // pred_check_branch
        %286 = sbr.rel (%p284) target = $region32
      $region31: #{weight_mapper_forward.1} parent=11 // pred_region
        _
      $region32: #{weight_mapper_forward.1} parent=11 // pred_fallthru
        _
      // Predicated region
      $region33: #{weight_mapper_forward.1} parent=11 // pred_check
        %p287 = pneg %p168
      $region34: #{weight_mapper_forward.1} parent=11 // pred_check_branch
        %289 = sbr.rel (%p287) target = $region36
      $region35: #{weight_mapper_forward.1} parent=11 // pred_region
        _
      $region36: #{weight_mapper_forward.1} parent=11 // pred_fallthru
        _
      // Predicated region
      $region37: #{weight_mapper_forward.1} parent=11 // pred_check
        %p290 = pneg %p189
      $region38: #{weight_mapper_forward.1} parent=11 // pred_check_branch
        %292 = sbr.rel (%p290) target = $region40
      $region39: #{weight_mapper_forward.1} parent=11 // pred_region
        _
      $region40: #{weight_mapper_forward.1} parent=11 // pred_fallthru
        _
      // Predicated region
      $region41: #{weight_mapper_forward.1} parent=11 // pred_check
        %p293 = pneg %p210
      $region42: #{weight_mapper_forward.1} parent=11 // pred_check_branch
        %295 = sbr.rel (%p293) target = $region44
      $region43: #{weight_mapper_forward.1} parent=11 // pred_region
        _
      $region44: #{weight_mapper_forward.1} parent=11 // pred_fallthru
        _
      // Predicated region
      $region45: #{weight_mapper_forward.1} parent=11 // pred_check
        %p296 = pneg %p231
      $region46: #{weight_mapper_forward.1} parent=11 // pred_check_branch
        %298 = sbr.rel (%p296) target = $region48
      $region47: #{weight_mapper_forward.1} parent=11 // pred_region
        _
      $region48: #{weight_mapper_forward.1} parent=11 // pred_fallthru
        _
    $region12: #{weight_mapper_forward.1} parent=5 // pred_fallthru
      _
    %p299 = scmp.lt.s32.totalorder %s16, 4
    // Predicated region
    $region49: #{weight_mapper_forward.1} parent=5 // pred_check
      %p300 = pneg %p299
    $region50: #{weight_mapper_forward.1} parent=5 // pred_check_branch
      %302 = sbr.rel (%p300) target = $region52
    $region51: #{weight_mapper_forward.1} parent=5 // pred_region
      // Predicated region
      $region53: #{weight_mapper_forward.1} parent=51 // pred_check
        %p303 = pneg %p36
      $region54: #{weight_mapper_forward.1} parent=51 // pred_check_branch
        %305 = sbr.rel (%p303) target = $region56
      $region55: #{weight_mapper_forward.1} parent=51 // pred_region
        %p306 = scmp.lt.s32.totalorder %s16, 3
        %s307 = scalar_select %p306, %s16, 3
        %s308 = smul.addr %s307, 2
        %s309 = smul.addr %s308, 8
        %s310 = scalar_lea.vmem %s0, %s309
      $region56: #{weight_mapper_forward.1} parent=51 // pred_fallthru
        _
    $region52: #{weight_mapper_forward.1} parent=5 // pred_fallthru
      _
    %p311 = scmp.le.s32.totalorder 1, %s16
    %p312 = scmp.lt.s32.totalorder %s16, 5
    %p313 = pnand %p311, %p312
    %p314 = pneg %p313
    // Predicated region
    $region57: #{weight_mapper_forward.1} parent=5 // pred_check
      _
    $region58: #{weight_mapper_forward.1} parent=5 // pred_check_branch
      %316 = sbr.rel (%p313) target = $region60
    $region59: #{weight_mapper_forward.1} parent=5 // pred_region
      %s317 = ssub.s32 %s16, 1
      %p318 = scmp.lt.s32.totalorder %s21, 3
      %s319 = scalar_select %p318, %s21, 3
      %s320 = smul.addr %s319, 2
      %s321 = smul.addr %s320, 8
      %s322 = scalar_lea.vmem %s0, %s321
      %p323 = pneg %p42
      %p324 = pneg %p39
      %p325 = pneg %p63
      %p326 = pneg %p60
      %p327 = pneg %p84
      %p328 = pneg %p81
      %p329 = pneg %p105
      %p330 = pneg %p102
      %p331 = pneg %p126
      %p332 = pneg %p123
      %p333 = pneg %p147
      %p334 = pneg %p144
      %p335 = pneg %p168
      %p336 = pneg %p165
      %p337 = pneg %p189
      %p338 = pneg %p186
      %p339 = pneg %p210
      %p340 = pneg %p207
      %p341 = pneg %p231
      %p342 = pneg %p228
      %p343 = pneg %p257
      %p344 = pneg %p254
      %p345 = scmp.lt.s32.totalorder %s21, 3
      %s346 = scalar_select %p345, %s21, 3
      %s347 = smul.addr %s346, 2
      %s348 = smul.addr %s347, 8
      %s349 = scalar_lea.vmem %s10, %s348
      %p350 = scmp.lt.s32.totalorder %s21, 3
      %s351 = scalar_select %p350, %s21, 3
      %s352 = smul.addr %s351, 2
      %s353 = smul.addr %s352, 8
      %s354 = scalar_lea.vmem %s0, %s353
      %p355 = scmp.lt.s32.totalorder %s21, 3
      %s356 = scalar_select %p355, %s21, 3
      %s357 = smul.addr %s356, 2
      %s358 = smul.addr %s357, 8
      %s359 = scalar_lea.vmem %s10, %s358
      %v360 = vld [vmem:[%s354] sm:$0xff]
      %v361 = vld [vmem:[%s354 + $0x8] sm:$0xff]
      %v362 = vld [vmem:[%s1] sm:$0xf]
      %v363 = vld [vmem:[%s2] sm:$0xf]
      %365 = vset.pattern.permute.xlu0 0
      %366 = vperm.xlu0 %365, %v363
      %v367 = vpop.permute.xlu0 %366
      %vm369 = vcmask 64512
      %v371 = vsel %vm369, %v362, 0
      %373 = vmatprep.subr.mxu0 %v361
      %374 = vmatpush1.msra.mxu0 %v360
      %375 = vmatprep.subr.mxu0 0.0
      %376 = vmatpush1.msra.mxu0 0.0
      %377 = vmatprep.subr.mxu0 0.0
      %378 = vmatpush1.msra.mxu0 0.0
      %379 = vmatprep.subr.mxu0 0.0
      %380 = vmatpush1.msra.mxu0 0.0
      %381 = vmatprep.subr.mxu0 0.0
      %382 = vmatpush1.msra.mxu0 0.0
      %383 = vmatprep.subr.mxu0 0.0
      %384 = vmatpush1.msra.mxu0 0.0
      %385 = vmatprep.subr.mxu0 0.0
      %386 = vmatpush1.msra.mxu0 0.0
      %387 = vmatprep.subr.mxu0 0.0
      %388 = vmatpush1.msra.mxu0 0.0
      %389 = vmatprep.subr.mxu0 0.0
      %390 = vmatpush1.msra.mxu0 0.0
      %391 = vmatprep.subr.mxu0 0.0
      %392 = vmatpush1.msra.mxu0 0.0
      %393 = vmatprep.subr.mxu0 0.0
      %394 = vmatpush1.msra.mxu0 0.0
      %395 = vmatprep.subr.mxu0 0.0
      %396 = vmatpush1.msra.mxu0 0.0
      %397 = vmatprep.subr.mxu0 0.0
      %398 = vmatpush1.msra.mxu0 0.0
      %399 = vmatprep.subr.mxu0 0.0
      %400 = vmatpush1.msra.mxu0 0.0
      %401 = vmatprep.subr.mxu0 0.0
      %402 = vmatpush1.msra.mxu0 0.0
      %403 = vmatprep.subr.mxu0 0.0
      %404 = vmatpush1.msra.mxu0 0.0
      %405 = vmatprep.subr.mxu0 0.0
      %406 = vmatpush1.msra.mxu0 0.0
      %407 = vmatprep.subr.mxu0 0.0
      %408 = vmatpush1.msra.mxu0 0.0
      %409 = vmatprep.subr.mxu0 0.0
      %410 = vmatpush1.msra.mxu0 0.0
      %411 = vmatprep.subr.mxu0 0.0
      %412 = vmatpush1.msra.mxu0 0.0
      %413 = vmatprep.subr.mxu0 0.0
      %414 = vmatpush1.msra.mxu0 0.0
      %415 = vmatprep.subr.mxu0 0.0
      %416 = vmatpush1.msra.mxu0 0.0
      %417 = vmatprep.subr.mxu0 0.0
      %418 = vmatpush1.msra.mxu0 0.0
      %419 = vmatprep.subr.mxu0 0.0
      %420 = vmatpush1.msra.mxu0 0.0
      %421 = vmatprep.subr.mxu0 0.0
      %422 = vmatpush1.msra.mxu0 0.0
      %423 = vmatprep.subr.mxu0 0.0
      %424 = vmatpush1.msra.mxu0 0.0
      %425 = vmatprep.subr.mxu0 0.0
      %426 = vmatpush1.msra.mxu0 0.0
      %427 = vmatprep.subr.mxu0 0.0
      %428 = vmatpush1.msra.mxu0 0.0
      %429 = vmatprep.subr.mxu0 0.0
      %430 = vmatpush1.msra.mxu0 0.0
      %431 = vmatprep.subr.mxu0 0.0
      %432 = vmatpush1.msra.mxu0 0.0
      %433 = vmatprep.subr.mxu0 0.0
      %434 = vmatpush1.msra.mxu0 0.0
      %435 = vmatprep.subr.mxu0 0.0
      %436 = vmatpush1.msra.mxu0 0.0
      %437 = vmatprep.mubr.f32.mxu0 0.0
      %438 = vmatmul.mubr.f32.gmra.mrb[0].mxu0 %v371
      %v439 = vpop.f32.mrb[0].mxu0
      %v440 = vadd.f32 %v367, %v439
      %v441 = vpop.f32.mrb[0].mxu0
      %v442 = vadd.f32 %v367, %v441
      %443 = vdwg.mxu0
      %v444 = vmax.f32 %v440, 0.0
      %v445 = vmax.f32 %v442, 0.0
      %446 = vst [vmem:[%s359] sm:$0xf] %v444
      %447 = vst [vmem:[%s359 + $0x8] sm:$0xf] %v445
      %v449 = vrot.slane %v444, 4
      %450 = vrot.lane.b32.xlu0 %v449, 64
      %v451 = vpop.permute.xlu0 %450
      %v454 = vrot.slane %v445, 4
      %455 = vrot.lane.b32.xlu0 %v454, 64
      %v456 = vpop.permute.xlu0 %455
      %vm458 = vcmask 1043456
      %v459 = vsel %vm458, %v444, %v451
      %v460 = vsel %vm458, %v445, %v456
      %v461 = vld [vmem:[%s3] sm:$0xf]
      %v462 = vld [vmem:[%s4] sm:$0xf]
      %464 = vset.pattern.permute.xlu0 0
      %465 = vperm.xlu0 %464, %v462
      %v466 = vpop.permute.xlu0 %465
      %vm468 = vcmask 130048
      %v470 = vsel %vm468, %v461, 0
      %472 = vmatprep.subr.mxu0 0.0
      %473 = vmatpush1.msra.mxu0 %v459
      %474 = vmatprep.subr.mxu0 0.0
      %475 = vmatpush1.msra.mxu0 %v460
      %476 = vmatprep.subr.mxu0 0.0
      %477 = vmatpush1.msra.mxu0 0.0
      %478 = vmatprep.subr.mxu0 0.0
      %479 = vmatpush1.msra.mxu0 0.0
      %480 = vmatprep.subr.mxu0 0.0
      %481 = vmatpush1.msra.mxu0 0.0
      %482 = vmatprep.subr.mxu0 0.0
      %483 = vmatpush1.msra.mxu0 0.0
      %484 = vmatprep.subr.mxu0 0.0
      %485 = vmatpush1.msra.mxu0 0.0
      %486 = vmatprep.subr.mxu0 0.0
      %487 = vmatpush1.msra.mxu0 0.0
      %488 = vmatprep.subr.mxu0 0.0
      %489 = vmatpush1.msra.mxu0 0.0
      %490 = vmatprep.subr.mxu0 0.0
      %491 = vmatpush1.msra.mxu0 0.0
      %492 = vmatprep.subr.mxu0 0.0
      %493 = vmatpush1.msra.mxu0 0.0
      %494 = vmatprep.subr.mxu0 0.0
      %495 = vmatpush1.msra.mxu0 0.0
      %496 = vmatprep.subr.mxu0 0.0
      %497 = vmatpush1.msra.mxu0 0.0
      %498 = vmatprep.subr.mxu0 0.0
      %499 = vmatpush1.msra.mxu0 0.0
      %500 = vmatprep.subr.mxu0 0.0
      %501 = vmatpush1.msra.mxu0 0.0
      %502 = vmatprep.subr.mxu0 0.0
      %503 = vmatpush1.msra.mxu0 0.0
      %504 = vmatprep.subr.mxu0 0.0
      %505 = vmatpush1.msra.mxu0 0.0
      %506 = vmatprep.subr.mxu0 0.0
      %507 = vmatpush1.msra.mxu0 0.0
      %508 = vmatprep.subr.mxu0 0.0
      %509 = vmatpush1.msra.mxu0 0.0
      %510 = vmatprep.subr.mxu0 0.0
      %511 = vmatpush1.msra.mxu0 0.0
      %512 = vmatprep.subr.mxu0 0.0
      %513 = vmatpush1.msra.mxu0 0.0
      %514 = vmatprep.subr.mxu0 0.0
      %515 = vmatpush1.msra.mxu0 0.0
      %516 = vmatprep.subr.mxu0 0.0
      %517 = vmatpush1.msra.mxu0 0.0
      %518 = vmatprep.subr.mxu0 0.0
      %519 = vmatpush1.msra.mxu0 0.0
      %520 = vmatprep.subr.mxu0 0.0
      %521 = vmatpush1.msra.mxu0 0.0
      %522 = vmatprep.subr.mxu0 0.0
      %523 = vmatpush1.msra.mxu0 0.0
      %524 = vmatprep.subr.mxu0 0.0
      %525 = vmatpush1.msra.mxu0 0.0
      %526 = vmatprep.subr.mxu0 0.0
      %527 = vmatpush1.msra.mxu0 0.0
      %528 = vmatprep.subr.mxu0 0.0
      %529 = vmatpush1.msra.mxu0 0.0
      %530 = vmatprep.subr.mxu0 0.0
      %531 = vmatpush1.msra.mxu0 0.0
      %532 = vmatprep.subr.mxu0 0.0
      %533 = vmatpush1.msra.mxu0 0.0
      %534 = vmatprep.subr.mxu0 0.0
      %535 = vmatpush1.msra.mxu0 0.0
      %536 = vmatprep.mubr.f32.mxu0 0.0
      %537 = vmatmul.mubr.f32.gmra.mrb[0].mxu0 %v470
      %v538 = vpop.f32.mrb[0].mxu0
      %v539 = vadd.f32 %v466, %v538
      %v540 = vpop.f32.mrb[0].mxu0
      %541 = vdwg.mxu0
      %v542 = vmax.f32 %v539, 0.0
      %v544 = vrot.slane %v542, 4
      %545 = vrot.lane.b32.xlu0 %v544, 112
      %v546 = vpop.permute.xlu0 %545
      %548 = vrot.lane.b32.xlu0 %v542, 96
      %v549 = vpop.permute.xlu0 %548
      %551 = vrot.lane.b32.xlu0 %v544, 80
      %v552 = vpop.permute.xlu0 %551
      %v554 = vsel %vm458, %v542, %v546
      %v555 = vsel %vm458, %v549, %v552
      %s556 = scalar_lea.vmem %s3, 4
      %v557 = vld [vmem:[%s556] sm:$0xf]
      %s558 = scalar_lea.vmem %s4, 4
      %v559 = vld [vmem:[%s558] sm:$0xf]
      %561 = vset.pattern.permute.xlu0 0
      %562 = vperm.xlu0 %561, %v559
      %v563 = vpop.permute.xlu0 %562
      %v566 = vsel %vm468, %v557, 0
      %568 = vmatprep.subr.mxu0 0.0
      %569 = vmatpush1.msra.mxu0 %v554
      %570 = vmatprep.subr.mxu0 0.0
      %571 = vmatpush1.msra.mxu0 %v555
      %572 = vmatprep.subr.mxu0 0.0
      %573 = vmatpush1.msra.mxu0 0.0
      %574 = vmatprep.subr.mxu0 0.0
      %575 = vmatpush1.msra.mxu0 0.0
      %576 = vmatprep.subr.mxu0 0.0
      %577 = vmatpush1.msra.mxu0 0.0
      %578 = vmatprep.subr.mxu0 0.0
      %579 = vmatpush1.msra.mxu0 0.0
      %580 = vmatprep.subr.mxu0 0.0
      %581 = vmatpush1.msra.mxu0 0.0
      %582 = vmatprep.subr.mxu0 0.0
      %583 = vmatpush1.msra.mxu0 0.0
      %584 = vmatprep.subr.mxu0 0.0
      %585 = vmatpush1.msra.mxu0 0.0
      %586 = vmatprep.subr.mxu0 0.0
      %587 = vmatpush1.msra.mxu0 0.0
      %588 = vmatprep.subr.mxu0 0.0
      %589 = vmatpush1.msra.mxu0 0.0
      %590 = vmatprep.subr.mxu0 0.0
      %591 = vmatpush1.msra.mxu0 0.0
      %592 = vmatprep.subr.mxu0 0.0
      %593 = vmatpush1.msra.mxu0 0.0
      %594 = vmatprep.subr.mxu0 0.0
      %595 = vmatpush1.msra.mxu0 0.0
      %596 = vmatprep.subr.mxu0 0.0
      %597 = vmatpush1.msra.mxu0 0.0
      %598 = vmatprep.subr.mxu0 0.0
      %599 = vmatpush1.msra.mxu0 0.0
      %600 = vmatprep.subr.mxu0 0.0
      %601 = vmatpush1.msra.mxu0 0.0
      %602 = vmatprep.subr.mxu0 0.0
      %603 = vmatpush1.msra.mxu0 0.0
      %604 = vmatprep.subr.mxu0 0.0
      %605 = vmatpush1.msra.mxu0 0.0
      %606 = vmatprep.subr.mxu0 0.0
      %607 = vmatpush1.msra.mxu0 0.0
      %608 = vmatprep.subr.mxu0 0.0
      %609 = vmatpush1.msra.mxu0 0.0
      %610 = vmatprep.subr.mxu0 0.0
      %611 = vmatpush1.msra.mxu0 0.0
      %612 = vmatprep.subr.mxu0 0.0
      %613 = vmatpush1.msra.mxu0 0.0
      %614 = vmatprep.subr.mxu0 0.0
      %615 = vmatpush1.msra.mxu0 0.0
      %616 = vmatprep.subr.mxu0 0.0
      %617 = vmatpush1.msra.mxu0 0.0
      %618 = vmatprep.subr.mxu0 0.0
      %619 = vmatpush1.msra.mxu0 0.0
      %620 = vmatprep.subr.mxu0 0.0
      %621 = vmatpush1.msra.mxu0 0.0
      %622 = vmatprep.subr.mxu0 0.0
      %623 = vmatpush1.msra.mxu0 0.0
      %624 = vmatprep.subr.mxu0 0.0
      %625 = vmatpush1.msra.mxu0 0.0
      %626 = vmatprep.subr.mxu0 0.0
      %627 = vmatpush1.msra.mxu0 0.0
      %628 = vmatprep.subr.mxu0 0.0
      %629 = vmatpush1.msra.mxu0 0.0
      %630 = vmatprep.subr.mxu0 0.0
      %631 = vmatpush1.msra.mxu0 0.0
      %632 = vmatprep.mubr.f32.mxu0 0.0
      %633 = vmatmul.mubr.f32.gmra.mrb[0].mxu0 %v566
      %v634 = vpop.f32.mrb[0].mxu0
      %v635 = vadd.f32 %v563, %v634
      %v636 = vpop.f32.mrb[0].mxu0
      %637 = vdwg.mxu0
      %v638 = vmax.f32 %v635, 0.0
      %v639 = vld [vmem:[%s8] sm:$0xff]
      %v640 = vld [vmem:[%s8 + $0x8] sm:$0xff]
      %v642 = vsel %vm468, %v638, 0
      %644 = vmatprep.subr.mxu0 0.0
      %645 = vmatpush1.msra.mxu0 %v639
      %646 = vmatprep.subr.mxu0 0.0
      %647 = vmatpush1.msra.mxu0 %v640
      %648 = vmatprep.subr.mxu0 0.0
      %649 = vmatpush1.msra.mxu0 0.0
      %650 = vmatprep.subr.mxu0 0.0
      %651 = vmatpush1.msra.mxu0 0.0
      %652 = vmatprep.subr.mxu0 0.0
      %653 = vmatpush1.msra.mxu0 0.0
      %654 = vmatprep.subr.mxu0 0.0
      %655 = vmatpush1.msra.mxu0 0.0
      %656 = vmatprep.subr.mxu0 0.0
      %657 = vmatpush1.msra.mxu0 0.0
      %658 = vmatprep.subr.mxu0 0.0
      %659 = vmatpush1.msra.mxu0 0.0
      %660 = vmatprep.subr.mxu0 0.0
      %661 = vmatpush1.msra.mxu0 0.0
      %662 = vmatprep.subr.mxu0 0.0
      %663 = vmatpush1.msra.mxu0 0.0
      %664 = vmatprep.subr.mxu0 0.0
      %665 = vmatpush1.msra.mxu0 0.0
      %666 = vmatprep.subr.mxu0 0.0
      %667 = vmatpush1.msra.mxu0 0.0
      %668 = vmatprep.subr.mxu0 0.0
      %669 = vmatpush1.msra.mxu0 0.0
      %670 = vmatprep.subr.mxu0 0.0
      %671 = vmatpush1.msra.mxu0 0.0
      %672 = vmatprep.subr.mxu0 0.0
      %673 = vmatpush1.msra.mxu0 0.0
      %674 = vmatprep.subr.mxu0 0.0
      %675 = vmatpush1.msra.mxu0 0.0
      %676 = vmatprep.subr.mxu0 0.0
      %677 = vmatpush1.msra.mxu0 0.0
      %678 = vmatprep.subr.mxu0 0.0
      %679 = vmatpush1.msra.mxu0 0.0
      %680 = vmatprep.subr.mxu0 0.0
      %681 = vmatpush1.msra.mxu0 0.0
      %682 = vmatprep.subr.mxu0 0.0
      %683 = vmatpush1.msra.mxu0 0.0
      %684 = vmatprep.subr.mxu0 0.0
      %685 = vmatpush1.msra.mxu0 0.0
      %686 = vmatprep.subr.mxu0 0.0
      %687 = vmatpush1.msra.mxu0 0.0
      %688 = vmatprep.subr.mxu0 0.0
      %689 = vmatpush1.msra.mxu0 0.0
      %690 = vmatprep.subr.mxu0 0.0
      %691 = vmatpush1.msra.mxu0 0.0
      %692 = vmatprep.subr.mxu0 0.0
      %693 = vmatpush1.msra.mxu0 0.0
      %694 = vmatprep.subr.mxu0 0.0
      %695 = vmatpush1.msra.mxu0 0.0
      %696 = vmatprep.subr.mxu0 0.0
      %697 = vmatpush1.msra.mxu0 0.0
      %698 = vmatprep.subr.mxu0 0.0
      %699 = vmatpush1.msra.mxu0 0.0
      %700 = vmatprep.subr.mxu0 0.0
      %701 = vmatpush1.msra.mxu0 0.0
      %702 = vmatprep.subr.mxu0 0.0
      %703 = vmatpush1.msra.mxu0 0.0
      %704 = vmatprep.subr.mxu0 0.0
      %705 = vmatpush1.msra.mxu0 0.0
      %706 = vmatprep.subr.mxu0 0.0
      %707 = vmatpush1.msra.mxu0 0.0
      %708 = vmatprep.mubr.f32.mxu0 0.0
      %709 = vmatmul.mubr.f32.gmra.mrb[0].mxu0 %v642
      %v710 = vpop.f32.mrb[0].mxu0
      %v711 = vadd.f32 0.0, %v710
      %v712 = vpop.f32.mrb[0].mxu0
      %713 = vdwg.mxu0
      %v714 = vmul.f32 %v711, 0.0625
      %s715 = scalar_lea.vmem %s6, 4
      %v716 = vld [vmem:[%s715] sm:$0xf]
      %vm717 = vcmask 31744
      %v719 = vsel %vm717, %v716, 0
      %v722 = vsel %vm458, %v714, 0
      %724 = vmatprep.subr.mxu0 0.0
      %725 = vmatpush1.msra.mxu0 %v722
      %726 = vmatprep.subr.mxu0 0.0
      %727 = vmatpush1.msra.mxu0 0.0
      %728 = vmatprep.subr.mxu0 0.0
      %729 = vmatpush1.msra.mxu0 0.0
      %730 = vmatprep.subr.mxu0 0.0
      %731 = vmatpush1.msra.mxu0 0.0
      %732 = vmatprep.subr.mxu0 0.0
      %733 = vmatpush1.msra.mxu0 0.0
      %734 = vmatprep.subr.mxu0 0.0
      %735 = vmatpush1.msra.mxu0 0.0
      %736 = vmatprep.subr.mxu0 0.0
      %737 = vmatpush1.msra.mxu0 0.0
      %738 = vmatprep.subr.mxu0 0.0
      %739 = vmatpush1.msra.mxu0 0.0
      %740 = vmatprep.subr.mxu0 0.0
      %741 = vmatpush1.msra.mxu0 0.0
      %742 = vmatprep.subr.mxu0 0.0
      %743 = vmatpush1.msra.mxu0 0.0
      %744 = vmatprep.subr.mxu0 0.0
      %745 = vmatpush1.msra.mxu0 0.0
      %746 = vmatprep.subr.mxu0 0.0
      %747 = vmatpush1.msra.mxu0 0.0
      %748 = vmatprep.subr.mxu0 0.0
      %749 = vmatpush1.msra.mxu0 0.0
      %750 = vmatprep.subr.mxu0 0.0
      %751 = vmatpush1.msra.mxu0 0.0
      %752 = vmatprep.subr.mxu0 0.0
      %753 = vmatpush1.msra.mxu0 0.0
      %754 = vmatprep.subr.mxu0 0.0
      %755 = vmatpush1.msra.mxu0 0.0
      %756 = vmatprep.subr.mxu0 0.0
      %757 = vmatpush1.msra.mxu0 0.0
      %758 = vmatprep.subr.mxu0 0.0
      %759 = vmatpush1.msra.mxu0 0.0
      %760 = vmatprep.subr.mxu0 0.0
      %761 = vmatpush1.msra.mxu0 0.0
      %762 = vmatprep.subr.mxu0 0.0
      %763 = vmatpush1.msra.mxu0 0.0
      %764 = vmatprep.subr.mxu0 0.0
      %765 = vmatpush1.msra.mxu0 0.0
      %766 = vmatprep.subr.mxu0 0.0
      %767 = vmatpush1.msra.mxu0 0.0
      %768 = vmatprep.subr.mxu0 0.0
      %769 = vmatpush1.msra.mxu0 0.0
      %770 = vmatprep.subr.mxu0 0.0
      %771 = vmatpush1.msra.mxu0 0.0
      %772 = vmatprep.subr.mxu0 0.0
      %773 = vmatpush1.msra.mxu0 0.0
      %774 = vmatprep.subr.mxu0 0.0
      %775 = vmatpush1.msra.mxu0 0.0
      %776 = vmatprep.subr.mxu0 0.0
      %777 = vmatpush1.msra.mxu0 0.0
      %778 = vmatprep.subr.mxu0 0.0
      %779 = vmatpush1.msra.mxu0 0.0
      %780 = vmatprep.subr.mxu0 0.0
      %781 = vmatpush1.msra.mxu0 0.0
      %782 = vmatprep.subr.mxu0 0.0
      %783 = vmatpush1.msra.mxu0 0.0
      %784 = vmatprep.subr.mxu0 0.0
      %785 = vmatpush1.msra.mxu0 0.0
      %786 = vmatprep.subr.mxu0 0.0
      %787 = vmatpush1.msra.mxu0 0.0
      %788 = vmatprep.mubr.f32.mxu0 0.0
      %789 = vmatmul.mubr.f32.gmra.mrb[0].mxu0 %v719
      %v790 = vpop.f32.mrb[0].mxu0
      %v791 = vadd.f32 0.0, %v790
      %v792 = vpop.f32.mrb[0].mxu0
      %793 = vdwg.mxu0
      %s794 = scalar_lea.vmem %s5, 4
      %v795 = vld [vmem:[%s794] sm:$0xf]
      %797 = vset.pattern.permute.xlu0 0
      %798 = vperm.xlu0 %797, %v791
      %v799 = vpop.permute.xlu0 %798
      %v802 = vsel %vm717, %v795, 0
      %v804 = vsel %vm458, %v638, 0
      %806 = vmatprep.subr.mxu0 0.0
      %807 = vmatpush1.msra.mxu0 %v804
      %808 = vmatprep.subr.mxu0 0.0
      %809 = vmatpush1.msra.mxu0 0.0
      %810 = vmatprep.subr.mxu0 0.0
      %811 = vmatpush1.msra.mxu0 0.0
      %812 = vmatprep.subr.mxu0 0.0
      %813 = vmatpush1.msra.mxu0 0.0
      %814 = vmatprep.subr.mxu0 0.0
      %815 = vmatpush1.msra.mxu0 0.0
      %816 = vmatprep.subr.mxu0 0.0
      %817 = vmatpush1.msra.mxu0 0.0
      %818 = vmatprep.subr.mxu0 0.0
      %819 = vmatpush1.msra.mxu0 0.0
      %820 = vmatprep.subr.mxu0 0.0
      %821 = vmatpush1.msra.mxu0 0.0
      %822 = vmatprep.subr.mxu0 0.0
      %823 = vmatpush1.msra.mxu0 0.0
      %824 = vmatprep.subr.mxu0 0.0
      %825 = vmatpush1.msra.mxu0 0.0
      %826 = vmatprep.subr.mxu0 0.0
      %827 = vmatpush1.msra.mxu0 0.0
      %828 = vmatprep.subr.mxu0 0.0
      %829 = vmatpush1.msra.mxu0 0.0
      %830 = vmatprep.subr.mxu0 0.0
      %831 = vmatpush1.msra.mxu0 0.0
      %832 = vmatprep.subr.mxu0 0.0
      %833 = vmatpush1.msra.mxu0 0.0
      %834 = vmatprep.subr.mxu0 0.0
      %835 = vmatpush1.msra.mxu0 0.0
      %836 = vmatprep.subr.mxu0 0.0
      %837 = vmatpush1.msra.mxu0 0.0
      %838 = vmatprep.subr.mxu0 0.0
      %839 = vmatpush1.msra.mxu0 0.0
      %840 = vmatprep.subr.mxu0 0.0
      %841 = vmatpush1.msra.mxu0 0.0
      %842 = vmatprep.subr.mxu0 0.0
      %843 = vmatpush1.msra.mxu0 0.0
      %844 = vmatprep.subr.mxu0 0.0
      %845 = vmatpush1.msra.mxu0 0.0
      %846 = vmatprep.subr.mxu0 0.0
      %847 = vmatpush1.msra.mxu0 0.0
      %848 = vmatprep.subr.mxu0 0.0
      %849 = vmatpush1.msra.mxu0 0.0
      %850 = vmatprep.subr.mxu0 0.0
      %851 = vmatpush1.msra.mxu0 0.0
      %852 = vmatprep.subr.mxu0 0.0
      %853 = vmatpush1.msra.mxu0 0.0
      %854 = vmatprep.subr.mxu0 0.0
      %855 = vmatpush1.msra.mxu0 0.0
      %856 = vmatprep.subr.mxu0 0.0
      %857 = vmatpush1.msra.mxu0 0.0
      %858 = vmatprep.subr.mxu0 0.0
      %859 = vmatpush1.msra.mxu0 0.0
      %860 = vmatprep.subr.mxu0 0.0
      %861 = vmatpush1.msra.mxu0 0.0
      %862 = vmatprep.subr.mxu0 0.0
      %863 = vmatpush1.msra.mxu0 0.0
      %864 = vmatprep.subr.mxu0 0.0
      %865 = vmatpush1.msra.mxu0 0.0
      %866 = vmatprep.subr.mxu0 0.0
      %867 = vmatpush1.msra.mxu0 0.0
      %868 = vmatprep.subr.mxu0 0.0
      %869 = vmatpush1.msra.mxu0 0.0
      %870 = vmatprep.mubr.f32.mxu0 0.0
      %871 = vmatmul.mubr.f32.gmra.mrb[0].mxu0 %v802
      %v872 = vpop.f32.mrb[0].mxu0
      %v873 = vadd.f32 %v799, %v872
      %v874 = vpop.f32.mrb[0].mxu0
      %875 = vdwg.mxu0
      %s876 = scalar_lea.vmem %s7, 4
      %v877 = vld [vmem:[%s876] sm:$0xf]
      %879 = vset.pattern.permute.xlu0 0
      %880 = vperm.xlu0 %879, %v877
      %v881 = vpop.permute.xlu0 %880
      %v883 = vadd.f32 %v873, %v881
      %v884 = vmax.f32 %v883, 0.0
      %v885 = vld [vmem:[%s6] sm:$0xf]
      %v887 = vsel %vm717, %v885, 0
      %v890 = vsel %vm458, %v884, 0
      %892 = vmatprep.subr.mxu0 0.0
      %893 = vmatpush1.msra.mxu0 %v890
      %894 = vmatprep.subr.mxu0 0.0
      %895 = vmatpush1.msra.mxu0 0.0
      %896 = vmatprep.subr.mxu0 0.0
      %897 = vmatpush1.msra.mxu0 0.0
      %898 = vmatprep.subr.mxu0 0.0
      %899 = vmatpush1.msra.mxu0 0.0
      %900 = vmatprep.subr.mxu0 0.0
      %901 = vmatpush1.msra.mxu0 0.0
      %902 = vmatprep.subr.mxu0 0.0
      %903 = vmatpush1.msra.mxu0 0.0
      %904 = vmatprep.subr.mxu0 0.0
      %905 = vmatpush1.msra.mxu0 0.0
      %906 = vmatprep.subr.mxu0 0.0
      %907 = vmatpush1.msra.mxu0 0.0
      %908 = vmatprep.subr.mxu0 0.0
      %909 = vmatpush1.msra.mxu0 0.0
      %910 = vmatprep.subr.mxu0 0.0
      %911 = vmatpush1.msra.mxu0 0.0
      %912 = vmatprep.subr.mxu0 0.0
      %913 = vmatpush1.msra.mxu0 0.0
      %914 = vmatprep.subr.mxu0 0.0
      %915 = vmatpush1.msra.mxu0 0.0
      %916 = vmatprep.subr.mxu0 0.0
      %917 = vmatpush1.msra.mxu0 0.0
      %918 = vmatprep.subr.mxu0 0.0
      %919 = vmatpush1.msra.mxu0 0.0
      %920 = vmatprep.subr.mxu0 0.0
      %921 = vmatpush1.msra.mxu0 0.0
      %922 = vmatprep.subr.mxu0 0.0
      %923 = vmatpush1.msra.mxu0 0.0
      %924 = vmatprep.subr.mxu0 0.0
      %925 = vmatpush1.msra.mxu0 0.0
      %926 = vmatprep.subr.mxu0 0.0
      %927 = vmatpush1.msra.mxu0 0.0
      %928 = vmatprep.subr.mxu0 0.0
      %929 = vmatpush1.msra.mxu0 0.0
      %930 = vmatprep.subr.mxu0 0.0
      %931 = vmatpush1.msra.mxu0 0.0
      %932 = vmatprep.subr.mxu0 0.0
      %933 = vmatpush1.msra.mxu0 0.0
      %934 = vmatprep.subr.mxu0 0.0
      %935 = vmatpush1.msra.mxu0 0.0
      %936 = vmatprep.subr.mxu0 0.0
      %937 = vmatpush1.msra.mxu0 0.0
      %938 = vmatprep.subr.mxu0 0.0
      %939 = vmatpush1.msra.mxu0 0.0
      %940 = vmatprep.subr.mxu0 0.0
      %941 = vmatpush1.msra.mxu0 0.0
      %942 = vmatprep.subr.mxu0 0.0
      %943 = vmatpush1.msra.mxu0 0.0
      %944 = vmatprep.subr.mxu0 0.0
      %945 = vmatpush1.msra.mxu0 0.0
      %946 = vmatprep.subr.mxu0 0.0
      %947 = vmatpush1.msra.mxu0 0.0
      %948 = vmatprep.subr.mxu0 0.0
      %949 = vmatpush1.msra.mxu0 0.0
      %950 = vmatprep.subr.mxu0 0.0
      %951 = vmatpush1.msra.mxu0 0.0
      %952 = vmatprep.subr.mxu0 0.0
      %953 = vmatpush1.msra.mxu0 0.0
      %954 = vmatprep.subr.mxu0 0.0
      %955 = vmatpush1.msra.mxu0 0.0
      %956 = vmatprep.mubr.f32.mxu0 0.0
      %957 = vmatmul.mubr.f32.gmra.mrb[0].mxu0 %v887
      %v958 = vpop.f32.mrb[0].mxu0
      %v959 = vadd.f32 0.0, %v958
      %v960 = vpop.f32.mrb[0].mxu0
      %961 = vdwg.mxu0
      %963 = vrot.lane.b32.xlu0 %v959, 16
      %v964 = vpop.permute.xlu0 %963
      %966 = vrot.lane.b32.xlu0 %v959, 32
      %v967 = vpop.permute.xlu0 %966
      %969 = vrot.lane.b32.xlu0 %v959, 48
      %v970 = vpop.permute.xlu0 %969
      %v972 = vsel %vm468, %v959, %v964
      %vm973 = vcmask 261120
      %v974 = vsel %vm973, %v972, %v967
      %vm975 = vcmask 392192
      %v976 = vsel %vm975, %v974, %v970
      %v977 = vld [vmem:[%s5] sm:$0xf]
      %v979 = vsel %vm717, %v977, 0
      %v981 = vsel %vm458, %v542, 0
      %983 = vmatprep.subr.mxu0 0.0
      %984 = vmatpush1.msra.mxu0 %v981
      %985 = vmatprep.subr.mxu0 0.0
      %986 = vmatpush1.msra.mxu0 0.0
      %987 = vmatprep.subr.mxu0 0.0
      %988 = vmatpush1.msra.mxu0 0.0
      %989 = vmatprep.subr.mxu0 0.0
      %990 = vmatpush1.msra.mxu0 0.0
      %991 = vmatprep.subr.mxu0 0.0
      %992 = vmatpush1.msra.mxu0 0.0
      %993 = vmatprep.subr.mxu0 0.0
      %994 = vmatpush1.msra.mxu0 0.0
      %995 = vmatprep.subr.mxu0 0.0
      %996 = vmatpush1.msra.mxu0 0.0
      %997 = vmatprep.subr.mxu0 0.0
      %998 = vmatpush1.msra.mxu0 0.0
      %999 = vmatprep.subr.mxu0 0.0
      %1000 = vmatpush1.msra.mxu0 0.0
      %1001 = vmatprep.subr.mxu0 0.0
      %1002 = vmatpush1.msra.mxu0 0.0
      %1003 = vmatprep.subr.mxu0 0.0
      %1004 = vmatpush1.msra.mxu0 0.0
      %1005 = vmatprep.subr.mxu0 0.0
      %1006 = vmatpush1.msra.mxu0 0.0
      %1007 = vmatprep.subr.mxu0 0.0
      %1008 = vmatpush1.msra.mxu0 0.0
      %1009 = vmatprep.subr.mxu0 0.0
      %1010 = vmatpush1.msra.mxu0 0.0
      %1011 = vmatprep.subr.mxu0 0.0
      %1012 = vmatpush1.msra.mxu0 0.0
      %1013 = vmatprep.subr.mxu0 0.0
      %1014 = vmatpush1.msra.mxu0 0.0
      %1015 = vmatprep.subr.mxu0 0.0
      %1016 = vmatpush1.msra.mxu0 0.0
      %1017 = vmatprep.subr.mxu0 0.0
      %1018 = vmatpush1.msra.mxu0 0.0
      %1019 = vmatprep.subr.mxu0 0.0
      %1020 = vmatpush1.msra.mxu0 0.0
      %1021 = vmatprep.subr.mxu0 0.0
      %1022 = vmatpush1.msra.mxu0 0.0
      %1023 = vmatprep.subr.mxu0 0.0
      %1024 = vmatpush1.msra.mxu0 0.0
      %1025 = vmatprep.subr.mxu0 0.0
      %1026 = vmatpush1.msra.mxu0 0.0
      %1027 = vmatprep.subr.mxu0 0.0
      %1028 = vmatpush1.msra.mxu0 0.0
      %1029 = vmatprep.subr.mxu0 0.0
      %1030 = vmatpush1.msra.mxu0 0.0
      %1031 = vmatprep.subr.mxu0 0.0
      %1032 = vmatpush1.msra.mxu0 0.0
      %1033 = vmatprep.subr.mxu0 0.0
      %1034 = vmatpush1.msra.mxu0 0.0
      %1035 = vmatprep.subr.mxu0 0.0
      %1036 = vmatpush1.msra.mxu0 0.0
      %1037 = vmatprep.subr.mxu0 0.0
      %1038 = vmatpush1.msra.mxu0 0.0
      %1039 = vmatprep.subr.mxu0 0.0
      %1040 = vmatpush1.msra.mxu0 0.0
      %1041 = vmatprep.subr.mxu0 0.0
      %1042 = vmatpush1.msra.mxu0 0.0
      %1043 = vmatprep.subr.mxu0 0.0
      %1044 = vmatpush1.msra.mxu0 0.0
      %1045 = vmatprep.subr.mxu0 0.0
      %1046 = vmatpush1.msra.mxu0 0.0
      %1047 = vmatprep.mubr.f32.mxu0 0.0
      %1048 = vmatmul.mubr.f32.gmra.mrb[0].mxu0 %v979
      %v1049 = vpop.f32.mrb[0].mxu0
      %v1050 = vadd.f32 %v976, %v1049
      %v1051 = vpop.f32.mrb[0].mxu0
      %1052 = vdwg.mxu0
      %v1053 = vld [vmem:[%s7] sm:$0xf]
      %1055 = vset.pattern.permute.xlu0 0
      %1056 = vperm.xlu0 %1055, %v1053
      %v1057 = vpop.permute.xlu0 %1056
      %v1059 = vadd.f32 %v1050, %v1057
      %v1060 = vmax.f32 %v1059, 0.0
      %1062 = vrot.lane.b32.xlu0 %v1060, 64
      %v1063 = vpop.permute.xlu0 %1062
      %vm1065 = vcmask 523264
      %v1066 = vsel %vm1065, %v1060, %v1063
      %v1068 = vrot.slane %v1066, 4
      %1070 = vst [vmem:[%s359] sm:$0xf0] %v1068
      %1071 = vst [vmem:[%s359 + $0x8] sm:$0xf0] %v1068
      %p1072 = scmp.lt.s32.totalorder %s21, 3
      %s1073 = scalar_select %p1072, %s21, 3
      %s1074 = smul.addr %s1073, 2
      %s1075 = smul.addr %s1074, 8
      %s1076 = scalar_lea.vmem %s10, %s1075
      // Predicated region
      $region61: #{weight_mapper_forward.1} parent=59 // pred_check
        %p1077 = pneg %p254
      $region62: #{weight_mapper_forward.1} parent=59 // pred_check_branch
        %1079 = sbr.rel (%p1077) target = $region64
      $region63: #{weight_mapper_forward.1} parent=59 // pred_region
        _
      $region64: #{weight_mapper_forward.1} parent=59 // pred_fallthru
        _
    $region60: #{weight_mapper_forward.1} parent=5 // pred_fallthru
      _
    %p1080 = scmp.le.s32.totalorder 2, %s16
    // Predicated region
    $region65: #{weight_mapper_forward.1} parent=5 // pred_check
      %p1081 = pneg %p1080
    $region66: #{weight_mapper_forward.1} parent=5 // pred_check_branch
      %1083 = sbr.rel (%p1081) target = $region68
    $region67: #{weight_mapper_forward.1} parent=5 // pred_region
      %s1084 = ssub.s32 %s16, 2
      // Predicated region
      $region69: #{weight_mapper_forward.1} parent=67 // pred_check
        %p1085 = pneg %p260
      $region70: #{weight_mapper_forward.1} parent=67 // pred_check_branch
        %1087 = sbr.rel (%p1085) target = $region72
      $region71: #{weight_mapper_forward.1} parent=67 // pred_region
        %p1088 = scmp.lt.s32.totalorder %s22, 3
        %s1089 = scalar_select %p1088, %s22, 3
        %s1090 = smul.addr %s1089, 2
        %s1091 = smul.addr %s1090, 8
        %s1092 = scalar_lea.vmem %s10, %s1091
      $region72: #{weight_mapper_forward.1} parent=67 // pred_fallthru
        _
    $region68: #{weight_mapper_forward.1} parent=5 // pred_fallthru
      _
  $region6: #{weight_mapper_forward.1} parent=0 // loop_footer
    %s20 = sadd.s32 1, %s16
  $region7: #{weight_mapper_forward.1} parent=0 // loop_footer_branch
    %15 = sbr.rel target = $region3
  $region8: #{weight_mapper_forward.1} parent=0 // loop_exit
    _

</llo_original>
